<compile_context>
chip_gen: v6e
topology: v6e:2x2x1
jax: 0.10.0
libtpu: 0.0.40
codegen_flags: <defaults>
</compile_context>

<pallas_src>
import jax
import jax.numpy as jnp
from jax.experimental import pallas as pl
from jax.experimental.pallas import tpu as pltpu

PSP_ALPHA = 0.6
SLIDING_WINDOW_SIZE = 50
NUM_KEEP_FIRST = 7


# ----------------------------------------------------------------------------
# Core math (traced inside both kernels)
# ----------------------------------------------------------------------------
def _masked_l1_abs_sum(t, p):
    """sum_{i,j} cond[j] * |t - p|[i,j] for one (B, D) pair (D == B).

    cond[j] = 1 iff channel j's |row-sum of (t - p)| ranks among the smallest
    int(PSP_ALPHA * B) channels (stable index tie-break).  The 1/(B*D) of
    F.l1_loss and the regular_weight are applied by the caller.
    """
    diff = t - p                                   # (B, D)
    B, D = diff.shape
    abs_diff = jnp.abs(diff)

    ones_col_d = jnp.ones((D, 1), jnp.float32)
    ones_col_b = jnp.ones((B, 1), jnp.float32)
    ones_row_b = jnp.ones((1, B), jnp.float32)

    # Ranking key a[i] = |sum_d diff[i, d]| via ONE standard MXU matmul.
    # (|mean| and |sum| give the same ordering; the 1/D is dropped
    # consistently from both sides of every compare.)
    a_col = jnp.abs(jnp.dot(diff, ones_col_d,
                            preferred_element_type=jnp.float32))        # (B, 1)

    # Both broadcast layouts of `a` derive from the SAME (B,1) vector, so the
    # exact-equality tie-break below is consistent and before[i,i] is always
    # False.  The lane-axis copy a[j] is produced by a tiny trans-B matmul
    # (ones (B,1) x a_col (B,1) contracted over the size-1 axis) -- a
    # relayout handled entirely by the MXU path instead of a small transpose.
    a_i = jnp.broadcast_to(a_col, (B, B))                               # a[i]
    a_j = jax.lax.dot_general(ones_col_b, a_col,
                              dimension_numbers=(((1,), (1,)), ((), ())),
                              preferred_element_type=jnp.float32)       # a[j]

    # Pairwise "sorted-before" relation: ascending |delta|, stable index
    # tie-break (matches a stable argsort; torch.argsort tie order is
    # unspecified anyway).
    row_idx = jax.lax.broadcasted_iota(jnp.int32, (B, B), 0)
    col_idx = jax.lax.broadcasted_iota(jnp.int32, (B, B), 1)
    before = jnp.logical_or(a_i < a_j,
                            jnp.logical_and(a_i == a_j, row_idx < col_idx))

    # rank[j] = #channels sorted before channel j.  Operands are exactly 0/1
    # and accumulation stays f32, so counting in bf16 is exact and cuts MXU
    # push cycles ~2-3x at large B (free at B=8).
    rank_row = jnp.dot(ones_row_b.astype(jnp.bfloat16),
                       before.astype(jnp.bfloat16),
                       preferred_element_type=jnp.float32)              # (1, B)
    k = int(PSP_ALPHA * B)                         # matches int(0.6 * num_channel)
    cond_row = (rank_row < float(k)).astype(jnp.float32)                # (1, B)

    # F.l1_loss(cond*t, cond*p) * (B*D) == sum_j cond[j] * sum_i |diff[i,j]|
    # (cond is 0/1).  Column sums of |diff| on the otherwise-idle MXU.
    col_abs = jnp.dot(ones_row_b, abs_diff,
                      preferred_element_type=jnp.float32)               # (1, D)

    # TODO(synk): for large B replace the O(B^2) pairwise-rank block with an
    # O(B) threshold selection (k-th smallest of a_col + index tie-break); the
    # (B,B) temporaries are what exhaust v7x's 64 MiB VMEM (B~1000-1400) and
    # v5e's 16 MiB scoped default (B~700) long before anything else.
    return jnp.sum(cond_row * col_abs)


# ----------------------------------------------------------------------------
# Kernels
# ----------------------------------------------------------------------------
def _gradual_style_loss_kernel(sched_ref, target_ref, prev_ref, loss_ref):
    """Single-instance loss; scalar result through SMEM (no VMEM writeback DMA).

    sched_ref  : SMEM (2,)   f32 -- [iters, total_iter]
    target_ref : VMEM (B, D) f32 -- target encodings (D == B by module semantics)
    prev_ref   : VMEM (B, D) f32 -- previous encodings
    loss_ref   : SMEM (1,)   f32 -- scalar loss output
    """
    t = target_ref[...]
    p = prev_ref[...]
    B, D = t.shape
    masked_sum = _masked_l1_abs_sum(t, p)

    # regular_weight = max(0, (iters - sw) / (total_iter - sw)), on the scalar unit.
    w = jnp.maximum(
        jnp.float32(0.0),
        (sched_ref[0] - jnp.float32(SLIDING_WINDOW_SIZE))
        / (sched_ref[1] - jnp.float32(SLIDING_WINDOW_SIZE)))
    loss_ref[0] = w * (masked_sum * (1.0 / float(B * D)))


def _gradual_style_loss_batched_kernel(iters_ref, titer_ref, target_ref, prev_ref,
                                       loss_ref):
    """One grid step = one independent (target, prev) loss instance.

    iters_ref  : SMEM (N,)      f32 -- per-instance iteration counter
    titer_ref  : SMEM (1,)      f32 -- total_iter (self.iter)
    target_ref : VMEM (1, B, D) f32 -- this instance's target encodings
    prev_ref   : VMEM (1, B, D) f32 -- this instance's previous encodings
    loss_ref   : VMEM (1, 128)  f32 -- loss broadcast across lanes (lane-dense store)
    """
    n = pl.program_id(0)
    t = target_ref[0]                              # (B, D)
    p = prev_ref[0]
    B, D = t.shape
    masked_sum = _masked_l1_abs_sum(t, p)
    w = jnp.maximum(
        jnp.float32(0.0),
        (iters_ref[n] - jnp.float32(SLIDING_WINDOW_SIZE))
        / (titer_ref[0] - jnp.float32(SLIDING_WINDOW_SIZE)))
    val = w * (masked_sum * (1.0 / float(B * D)))
    loss_ref[...] = jnp.full((1, 128), val, jnp.float32)


# ----------------------------------------------------------------------------
# Wrappers
# ----------------------------------------------------------------------------
def _maybe_vmem_limit(B, D):
    # Rough resident f32/i32 temporary footprint (diff, |diff| + ~7 (B,B) temps).
    footprint = 4 * (2 * B * D + 7 * B * B)
    if footprint <= 12 * (1 << 20):
        return None
    # Default scoped-VMEM (16 MiB v5e / 32 MiB v6e, v7x) is hit long before the
    # physical limit (64 MiB v7x, 128 MiB v5e/v6e); raise it explicitly so the
    # whole-array path survives to larger B before a D-tiled grid is needed.
    # TODO(synk): past ~B=1000 on v7x (64 MiB) / ~B=2000 on 128 MiB parts,
    # switch to a D-tiled two-pass grid: reduction (D) axis last, >=512-lane
    # blocks, rowsum / col_abs partials accumulated in VMEM scratch gated by
    # pl.when(k == 0 / k == last).
    return pltpu.CompilerParams(
        vmem_limit_bytes=min(2 * footprint, 96 * (1 << 20)))


def gradual_style_loss(ref_latents, iters, total_iter, prev=None):
    """Functional equivalent of GradualStyleLoss.forward.

    Returns (loss_scalar, new_prev).
    """
    batch_size = ref_latents.shape[0]
    target = ref_latents.reshape(batch_size, -1).astype(jnp.float32)

    keep_num = NUM_KEEP_FIRST * 512
    target = target[:, :keep_num]                  # clamps like torch when D < keep_num
    B, D = target.shape
    # The module's `cond.unsqueeze(0) * target_encodings` broadcast requires D == B.
    assert D == B, "GradualStyleLoss broadcast semantics require features == batch"

    if prev is None:
        prev = jnp.zeros_like(target)
    prev = prev.astype(jnp.float32)

    # iters / total_iter ride to SMEM; the fused scale is computed in-kernel.
    sched = jnp.stack([jnp.asarray(iters, dtype=jnp.float32),
                       jnp.asarray(total_iter, dtype=jnp.float32)])

    # Single invocation, whole arrays resident: no grid, no block double-buffering.
    # At the module's real ~8x8 size this call is launch/DMA dominated -- use
    # gradual_style_loss_batched to amortize across several loss instances.
    loss = pl.pallas_call(
        _gradual_style_loss_kernel,
        out_shape=jax.ShapeDtypeStruct((1,), jnp.float32),
        in_specs=[
            pl.BlockSpec(memory_space=pltpu.MemorySpace.SMEM),   # [iters, total_iter]
            pl.BlockSpec(memory_space=pltpu.MemorySpace.VMEM),   # target
            pl.BlockSpec(memory_space=pltpu.MemorySpace.VMEM),   # prev
        ],
        out_specs=pl.BlockSpec(memory_space=pltpu.MemorySpace.SMEM),
        compiler_params=_maybe_vmem_limit(B, D),
    )(sched, target, prev)

    new_prev = target  # self.prev = target_encodings.detach().clone()
    return loss[0], new_prev


def gradual_style_loss_batched(targets, prevs, iters, total_iter):
    """N independent GradualStyleLoss instances fused into ONE gridded call.

    targets, prevs : (N, B, D) f32, already flattened & clipped (D == B)
    iters          : (N,) per-instance iteration counters
    total_iter     : scalar (the module's self.iter)
    Returns (N,) f32 losses.

    The leading grid axis is marked "parallel" so v7x's two TensorCores split
    the batch; each grid step writes its own lane-dense (1, 128) output block.
    """
    targets = jnp.asarray(targets, jnp.float32)
    prevs = jnp.asarray(prevs, jnp.float32)
    N, B, D = targets.shape
    assert D == B, "GradualStyleLoss broadcast semantics require features == batch"
    iters_f = jnp.asarray(iters, jnp.float32).reshape(N)
    titer_f = jnp.asarray(total_iter, jnp.float32).reshape(1)

    losses = pl.pallas_call(
        _gradual_style_loss_batched_kernel,
        out_shape=jax.ShapeDtypeStruct((N, 128), jnp.float32),
        grid=(N,),
        in_specs=[
            pl.BlockSpec(memory_space=pltpu.MemorySpace.SMEM),           # iters (N,)
            pl.BlockSpec(memory_space=pltpu.MemorySpace.SMEM),           # total_iter (1,)
            pl.BlockSpec((1, B, D), lambda n: (n, 0, 0)),                # targets
            pl.BlockSpec((1, B, D), lambda n: (n, 0, 0)),                # prevs
        ],
        out_specs=pl.BlockSpec((1, 128), lambda n: (n, 0)),
        compiler_params=pltpu.CompilerParams(dimension_semantics=("parallel",)),
    )(iters_f, titer_f, targets, prevs)
    return losses[:, 0]


# ----------------------------------------------------------------------------
# Pure-JAX reference mirroring the PyTorch module line-by-line
# ----------------------------------------------------------------------------
def reference_loss(ref_latents, iters, total_iter, prev=None):
    batch_size = ref_latents.shape[0]
    t = ref_latents.reshape(batch_size, -1).astype(jnp.float32)
    t = t[:, : NUM_KEEP_FIRST * 512]
    if prev is None:
        prev = jnp.zeros_like(t)
    w = max(0.0, (iters - SLIDING_WINDOW_SIZE) / (total_iter - SLIDING_WINDOW_SIZE))
    num_channel = prev.shape[0]
    delta_w = (t - prev).mean(axis=1)
    order = jnp.argsort(jnp.abs(delta_w))
    chosen = order[: int(PSP_ALPHA * num_channel)]
    cond = jnp.zeros((num_channel,), jnp.float32).at[chosen].set(1.0)[None, :]
    return jnp.float32(w) * jnp.mean(jnp.abs(cond * t - cond * prev))


if __name__ == "__main__":
    key = jax.random.PRNGKey(0)
    k0, k1, k2, k3 = jax.random.split(key, 4)

    # Small shapes consistent with the module: flattened feature dim (2*4=8)
    # equals batch (8), which the module's broadcast requires.
    B, C, S = 8, 2, 4
    ref_latents = jax.random.normal(k0, (B, C, S), dtype=jnp.float32)
    iters, total_iter = 75, 100  # total_iter plays the role of self.iter

    # First call: self.prev is None -> zeros.
    loss, new_prev = gradual_style_loss(ref_latents, iters, total_iter, prev=None)
    loss = jax.block_until_ready(loss)
    ref = reference_loss(ref_latents, iters, total_iter, prev=None)
    assert jnp.allclose(loss, ref, rtol=1e-5, atol=1e-6), (loss, ref)

    # Second call with carried state (self.prev = previous target encodings).
    ref_latents2 = jax.random.normal(k1, (B, C, S), dtype=jnp.float32)
    loss2, _ = gradual_style_loss(ref_latents2, 90, total_iter, prev=new_prev)
    loss2 = jax.block_until_ready(loss2)
    ref2 = reference_loss(ref_latents2, 90, total_iter, prev=new_prev)
    assert jnp.allclose(loss2, ref2, rtol=1e-5, atol=1e-6), (loss2, ref2)

    # Batched path: N independent (target, prev) pairs in one gridded call
    # (amortizes the launch/DMA overhead that dominates the real 8x8 shape).
    N = 4
    targets_b = jax.random.normal(k2, (N, B, B), dtype=jnp.float32)
    prevs_b = jax.random.normal(k3, (N, B, B), dtype=jnp.float32)
    iters_list = [30, 60, 75, 100]   # first entry exercises the max(0, .) clamp
    losses_b = jax.block_until_ready(
        gradual_style_loss_batched(targets_b, prevs_b, iters_list, total_iter))
    for i in range(N):
        ref_i = reference_loss(targets_b[i], iters_list[i], total_iter,
                               prev=prevs_b[i])
        assert jnp.allclose(losses_b[i], ref_i, rtol=1e-5, atol=1e-6), \
            (i, losses_b[i], ref_i)

    print("KERNEL_OK")
</pallas_src>

<mosaic_0001>
module attributes {stable_mosaic.version = 11 : i64} {
  func.func @_gradual_style_loss_kernel(%arg0: memref<2xf32, #tpu.memory_space<smem>>, %arg1: memref<8x8xf32, #tpu.memory_space<vmem>>, %arg2: memref<8x8xf32, #tpu.memory_space<vmem>>, %arg3: memref<1xf32, #tpu.memory_space<smem>>) attributes {dimension_semantics = [], scalar_prefetch = 0 : i64, scratch_operands = 0 : i64, tpu.core_type = #tpu.core_type<tc>} {
    %c0 = arith.constant 0 : index
    %c0_0 = arith.constant 0 : index
    %0 = vector.load %arg1[%c0, %c0_0] : memref<8x8xf32, #tpu.memory_space<vmem>>, vector<8x8xf32>
    %c0_1 = arith.constant 0 : index
    %c0_2 = arith.constant 0 : index
    %1 = vector.load %arg2[%c0_1, %c0_2] : memref<8x8xf32, #tpu.memory_space<vmem>>, vector<8x8xf32>
    %2 = arith.subf %0, %1 : vector<8x8xf32>
    %3 = math.absf %2 : vector<8x8xf32>
    %cst = arith.constant 1.000000e+00 : f32
    %4 = vector.broadcast %cst : f32 to vector<8x1xf32>
    %cst_3 = arith.constant 1.000000e+00 : f32
    %5 = vector.broadcast %cst_3 : f32 to vector<8x1xf32>
    %cst_4 = arith.constant 1.000000e+00 : f32
    %6 = vector.broadcast %cst_4 : f32 to vector<1x8xf32>
    %cst_5 = arith.constant dense<0.000000e+00> : vector<8x1xf32>
    %7 = tpu.matmul %2, %4, %cst_5 {dimension_numbers = #tpu.dot_dimension_numbers<[1], [0], [0], [1], [0, 0, 1, 1], [], []>} : vector<8x8xf32>, vector<8x1xf32>, vector<8x1xf32> -> vector<8x1xf32>
    %8 = math.absf %7 : vector<8x1xf32>
    %9 = vector.shape_cast %8 : vector<8x1xf32> to vector<8x1xf32>
    %10 = vector.broadcast %9 : vector<8x1xf32> to vector<8x8xf32>
    %cst_6 = arith.constant dense<0.000000e+00> : vector<8x8xf32>
    %11 = tpu.matmul %5, %8, %cst_6 {dimension_numbers = #tpu.dot_dimension_numbers<[1], [1], [0], [0], [0, 0, 1, 0], [], []>} : vector<8x1xf32>, vector<8x1xf32>, vector<8x8xf32> -> vector<8x8xf32>
    %12 = tpu.iota {dimensions = array<i32: 0>} : vector<8x8xi32>
    %13 = tpu.iota {dimensions = array<i32: 1>} : vector<8x8xi32>
    %14 = arith.cmpf olt, %10, %11 : vector<8x8xf32>
    %15 = arith.cmpf oeq, %10, %11 : vector<8x8xf32>
    %16 = arith.cmpi slt, %12, %13 : vector<8x8xi32>
    %17 = arith.andi %15, %16 : vector<8x8xi1>
    %18 = arith.ori %14, %17 : vector<8x8xi1>
    %19 = arith.truncf %6 : vector<1x8xf32> to vector<1x8xbf16>
    %20 = arith.extui %18 : vector<8x8xi1> to vector<8x8xi32>
    %21 = arith.sitofp %20 : vector<8x8xi32> to vector<8x8xf32>
    %22 = arith.truncf %21 : vector<8x8xf32> to vector<8x8xbf16>
    %cst_7 = arith.constant dense<0.000000e+00> : vector<1x8xf32>
    %23 = tpu.matmul %19, %22, %cst_7 {dimension_numbers = #tpu.dot_dimension_numbers<[1], [0], [0], [1], [0, 0, 1, 1], [], []>} : vector<1x8xbf16>, vector<8x8xbf16>, vector<1x8xf32> -> vector<1x8xf32>
    %cst_8 = arith.constant 4.000000e+00 : f32
    %24 = vector.broadcast %cst_8 : f32 to vector<1x8xf32>
    %25 = arith.cmpf olt, %23, %24 : vector<1x8xf32>
    %26 = arith.extui %25 : vector<1x8xi1> to vector<1x8xi32>
    %27 = arith.sitofp %26 : vector<1x8xi32> to vector<1x8xf32>
    %cst_9 = arith.constant dense<0.000000e+00> : vector<1x8xf32>
    %28 = tpu.matmul %6, %3, %cst_9 {dimension_numbers = #tpu.dot_dimension_numbers<[1], [0], [0], [1], [0, 0, 1, 1], [], []>} : vector<1x8xf32>, vector<8x8xf32>, vector<1x8xf32> -> vector<1x8xf32>
    %29 = arith.mulf %27, %28 : vector<1x8xf32>
    %30 = vector.shape_cast %29 : vector<1x8xf32> to vector<1x1x8xf32>
    %cst_10 = arith.constant dense<0.000000e+00> : vector<1xf32>
    %31 = vector.multi_reduction <add>, %30, %cst_10 [1, 2] : vector<1x1x8xf32> to vector<1xf32>
    %32 = vector.shape_cast %31 : vector<1xf32> to vector<1x1x1xf32>
    %33 = vector.extract %32[0, 0, 0] : f32 from vector<1x1x1xf32>
    %c0_11 = arith.constant 0 : index
    %34 = memref.load %arg0[%c0_11] : memref<2xf32, #tpu.memory_space<smem>>
    %cst_12 = arith.constant 5.000000e+01 : f32
    %35 = arith.subf %34, %cst_12 : f32
    %c1 = arith.constant 1 : index
    %36 = memref.load %arg0[%c1] : memref<2xf32, #tpu.memory_space<smem>>
    %cst_13 = arith.constant 5.000000e+01 : f32
    %37 = arith.subf %36, %cst_13 : f32
    %38 = arith.divf %35, %37 : f32
    %cst_14 = arith.constant 0.000000e+00 : f32
    %39 = arith.maximumf %cst_14, %38 : f32
    %cst_15 = arith.constant 1.562500e-02 : f32
    %40 = arith.mulf %33, %cst_15 : f32
    %41 = arith.mulf %39, %40 : f32
    %c0_16 = arith.constant 0 : index
    %42 = memref.load %arg3[%c0_16] : memref<1xf32, #tpu.memory_space<smem>>
    memref.store %41, %arg3[%c0_16] : memref<1xf32, #tpu.memory_space<smem>>
    return
  }
}

</mosaic_0001>

<llo_original>
// kernel: tpu_custom_call.1
$region0: #{tpu_custom_call.1}
  #allocation0 [shape = 'u32[]', space=smem, size = 0x4, offset = 0x4, fixed_abs, tag = 'smem constant byte address 0x4 - core index']
  #allocation1 [shape = 'u32[144,128]{1,0:T(1,128)}', space=vmem, size = 0x12000, scoped, tag = 'internal scratch']
  %s0 = inlined_call_operand.hbm [shape: f32[2], index: 0, kind: input, shape index: {}]
  %s1 = inlined_call_operand.hbm [shape: f32[8,8], index: 1, kind: input, shape index: {}]
  %s2 = inlined_call_operand.hbm [shape: f32[8,8], index: 2, kind: input, shape index: {}]
  %s3 = inlined_call_operand.hbm [shape: f32[1], index: 3, kind: output, shape index: {}]
  %s4 = sld [smem:[#allocation0]]
  $region34: #{tpu_custom_call.1} parent=0
    _
  %s6 = ssub.s32 1, %s4
  %s7 = scalar_select 0, %s6, %s4
  $region1: #{tpu_custom_call.1} parent=0
    #allocation2 [shape = 'u8[512]{0}', space=smem, size = 0x200, scoped, tag = 'input window, operand 0, single buffered']
    #allocation3 [shape = 's32[1]{0}', space=sflag, size = 0x4, scoped, tag = 'scoped memory for tpu_custom_call.1']
    #allocation4 [shape = 's32[1]{0}', space=sflag, size = 0x4, scoped, tag = 'scoped memory for tpu_custom_call.1']
    #allocation5 [shape = 's32[1]{0}', space=sflag, size = 0x4, scoped, tag = 'scoped memory for tpu_custom_call.1']
    #allocation6 [shape = 'u8[4096]{0}', space=vmem, size = 0x1000, scoped, tag = 'input window, operand 1, single buffered']
    #allocation7 [shape = 'u8[4096]{0}', space=vmem, size = 0x1000, scoped, tag = 'input window, operand 2, single buffered']
    #allocation8 [shape = 's32[1]{0}', space=sflag, size = 0x4, scoped, tag = 'scoped memory for tpu_custom_call.1']
    #allocation9 [shape = 'u8[512]{0}', space=smem, size = 0x200, scoped, tag = 'output window, operand 0, single buffered']
    %8 = vsyncpa [#allocation4], 0
    %9 = vsyncpa [#allocation3], 0
    %10 = vsyncpa [#allocation8], 0
    %11 = vsyncpa [#allocation5], 0
    // Predicated region
    $region2: #{tpu_custom_call.1} parent=1 // pred_check
      _
    $region3: #{tpu_custom_call.1} parent=1 // pred_check_branch
      %13 = sbr.rel (0) target = $region5
    $region4: #{tpu_custom_call.1} parent=1 // pred_region
      %s15 = ssub.s32 16, 16
      %16 = vsyncadd [#allocation4], %s15
      %19 = dma.hbm_to_smem %s0, 16, [#allocation2], [#allocation4]
    $region5: #{tpu_custom_call.1} parent=1 // pred_fallthru
      _
    // Predicated region
    $region6: #{tpu_custom_call.1} parent=1 // pred_check
      _
    $region7: #{tpu_custom_call.1} parent=1 // pred_check_branch
      %21 = sbr.rel (0) target = $region9
    $region8: #{tpu_custom_call.1} parent=1 // pred_region
      %s23 = ssub.s32 128, 128
      %24 = vsyncadd [#allocation3], %s23
      %s26 = sshll.u32 [#allocation6], 4
      %s27 = int_to_ptr.vmem [resolvable:$true] %s26
      %29 = dma.hbm_to_vmem [thread:$0]  %s1, 128, %s27, [#allocation3]
    $region9: #{tpu_custom_call.1} parent=1 // pred_fallthru
      _
    // Predicated region
    $region10: #{tpu_custom_call.1} parent=1 // pred_check
      _
    $region11: #{tpu_custom_call.1} parent=1 // pred_check_branch
      %31 = sbr.rel (0) target = $region13
    $region12: #{tpu_custom_call.1} parent=1 // pred_region
      %s33 = ssub.s32 128, 128
      %34 = vsyncadd [#allocation8], %s33
      %s36 = sshll.u32 [#allocation7], 4
      %s37 = int_to_ptr.vmem [resolvable:$true] %s36
      %39 = dma.hbm_to_vmem [thread:$0]  %s2, 128, %s37, [#allocation8]
    $region13: #{tpu_custom_call.1} parent=1 // pred_fallthru
      _
    // Predicated region
    $region14: #{tpu_custom_call.1} parent=1 // pred_check
      _
    $region15: #{tpu_custom_call.1} parent=1 // pred_check_branch
      %41 = sbr.rel (0) target = $region17
    $region16: #{tpu_custom_call.1} parent=1 // pred_region
      %42 = dma.done [#allocation4], 16
    $region17: #{tpu_custom_call.1} parent=1 // pred_fallthru
      _
    // Predicated region
    $region18: #{tpu_custom_call.1} parent=1 // pred_check
      _
    $region19: #{tpu_custom_call.1} parent=1 // pred_check_branch
      %44 = sbr.rel (0) target = $region21
    $region20: #{tpu_custom_call.1} parent=1 // pred_region
      %45 = dma.done [#allocation3], 128
    $region21: #{tpu_custom_call.1} parent=1 // pred_fallthru
      _
    // Predicated region
    $region22: #{tpu_custom_call.1} parent=1 // pred_check
      _
    $region23: #{tpu_custom_call.1} parent=1 // pred_check_branch
      %47 = sbr.rel (0) target = $region25
    $region24: #{tpu_custom_call.1} parent=1 // pred_region
      %48 = dma.done [#allocation8], 128
    $region25: #{tpu_custom_call.1} parent=1 // pred_fallthru
      _
    %49 = sfence
    %v52 = vld [vmem:[#allocation6] sm:$0xff]
    %v53 = vld [vmem:[#allocation7] sm:$0xff]
    %v54 = vsub.f32 %v52, %v53
    %v55 = vand.u32 2147483647, %v54
    %vm56 = vcmask 64512
    %v58 = vsel %vm56, %v54, 0
    %60 = vmatprep.subr.mxu0 0.0
    %61 = vmatpush1.msra.mxu0 0.0
    %62 = vmatprep.subr.mxu0 0.0
    %63 = vmatpush1.msra.mxu0 0.0
    %64 = vmatprep.subr.mxu0 0.0
    %65 = vmatpush1.msra.mxu0 0.0
    %66 = vmatprep.subr.mxu0 0.0
    %67 = vmatpush1.msra.mxu0 0.0
    %68 = vmatprep.subr.mxu0 0.0
    %69 = vmatpush1.msra.mxu0 0.0
    %70 = vmatprep.subr.mxu0 0.0
    %71 = vmatpush1.msra.mxu0 0.0
    %72 = vmatprep.subr.mxu0 0.0
    %73 = vmatpush1.msra.mxu0 0.0
    %74 = vmatprep.subr.mxu0 0.0
    %75 = vmatpush1.msra.mxu0 0.0
    %76 = vmatprep.subr.mxu0 0.0
    %77 = vmatpush1.msra.mxu0 0.0
    %78 = vmatprep.subr.mxu0 0.0
    %79 = vmatpush1.msra.mxu0 0.0
    %80 = vmatprep.subr.mxu0 0.0
    %81 = vmatpush1.msra.mxu0 0.0
    %82 = vmatprep.subr.mxu0 0.0
    %83 = vmatpush1.msra.mxu0 0.0
    %84 = vmatprep.subr.mxu0 0.0
    %85 = vmatpush1.msra.mxu0 0.0
    %86 = vmatprep.subr.mxu0 0.0
    %87 = vmatpush1.msra.mxu0 0.0
    %88 = vmatprep.subr.mxu0 0.0
    %89 = vmatpush1.msra.mxu0 0.0
    %90 = vmatprep.subr.mxu0 0.0
    %91 = vmatpush1.msra.mxu0 1.0
    %92 = vmatprep.subr.mxu0 0.0
    %93 = vmatpush2.msra.mxu0 0.0
    %94 = vmatprep.subr.mxu0 0.0
    %95 = vmatpush2.msra.mxu0 0.0
    %96 = vmatprep.subr.mxu0 0.0
    %97 = vmatpush2.msra.mxu0 0.0
    %98 = vmatprep.subr.mxu0 0.0
    %99 = vmatpush2.msra.mxu0 0.0
    %100 = vmatprep.subr.mxu0 0.0
    %101 = vmatpush2.msra.mxu0 0.0
    %102 = vmatprep.subr.mxu0 0.0
    %103 = vmatpush2.msra.mxu0 0.0
    %104 = vmatprep.subr.mxu0 0.0
    %105 = vmatpush2.msra.mxu0 0.0
    %106 = vmatprep.subr.mxu0 0.0
    %107 = vmatpush2.msra.mxu0 0.0
    %108 = vmatprep.subr.mxu0 0.0
    %109 = vmatpush2.msra.mxu0 0.0
    %110 = vmatprep.subr.mxu0 0.0
    %111 = vmatpush2.msra.mxu0 0.0
    %112 = vmatprep.subr.mxu0 0.0
    %113 = vmatpush2.msra.mxu0 0.0
    %114 = vmatprep.subr.mxu0 0.0
    %115 = vmatpush2.msra.mxu0 0.0
    %116 = vmatprep.subr.mxu0 0.0
    %117 = vmatpush2.msra.mxu0 0.0
    %118 = vmatprep.subr.mxu0 0.0
    %119 = vmatpush2.msra.mxu0 0.0
    %120 = vmatprep.subr.mxu0 0.0
    %121 = vmatpush2.msra.mxu0 0.0
    %122 = vmatprep.subr.mxu0 0.0
    %123 = vmatpush2.msra.mxu0 0.0
    %124 = vmatprep.mubr.f32.mxu0 0.0
    %125 = vmatmul.mubr.f32.gmra.mxu0 %v58
    %v126 = vpop.f32.mrf.mxu0
    %v127 = vadd.f32 0.0, %v126
    %v128 = vpop.f32.mrf.mxu0
    %129 = vdwg.mxu0
    %v130 = vand.u32 2147483647, %v127
    %132 = vset.pattern.permute.xlu0 0
    %133 = vperm.xlu0 %132, %v130
    %v134 = vpop.permute.xlu0 %133
    %vm136 = vcmask 7168
    %v138 = vsel %vm136, 1.0, 0
    %v140 = vsel %vm136, %v130, 0
    %142 = vmatprep.subr.mxu0 0.0
    %143 = vmatpush1.xpose.msra.mxu0 0.0
    %144 = vmatprep.subr.mxu0 0.0
    %145 = vmatpush1.xpose.msra.mxu0 0.0
    %146 = vmatprep.subr.mxu0 0.0
    %147 = vmatpush1.xpose.msra.mxu0 0.0
    %148 = vmatprep.subr.mxu0 0.0
    %149 = vmatpush1.xpose.msra.mxu0 0.0
    %150 = vmatprep.subr.mxu0 0.0
    %151 = vmatpush1.xpose.msra.mxu0 0.0
    %152 = vmatprep.subr.mxu0 0.0
    %153 = vmatpush1.xpose.msra.mxu0 0.0
    %154 = vmatprep.subr.mxu0 0.0
    %155 = vmatpush1.xpose.msra.mxu0 0.0
    %156 = vmatprep.subr.mxu0 0.0
    %157 = vmatpush1.xpose.msra.mxu0 0.0
    %158 = vmatprep.subr.mxu0 0.0
    %159 = vmatpush1.xpose.msra.mxu0 0.0
    %160 = vmatprep.subr.mxu0 0.0
    %161 = vmatpush1.xpose.msra.mxu0 0.0
    %162 = vmatprep.subr.mxu0 0.0
    %163 = vmatpush1.xpose.msra.mxu0 0.0
    %164 = vmatprep.subr.mxu0 0.0
    %165 = vmatpush1.xpose.msra.mxu0 0.0
    %166 = vmatprep.subr.mxu0 0.0
    %167 = vmatpush1.xpose.msra.mxu0 0.0
    %168 = vmatprep.subr.mxu0 0.0
    %169 = vmatpush1.xpose.msra.mxu0 0.0
    %170 = vmatprep.subr.mxu0 0.0
    %171 = vmatpush1.xpose.msra.mxu0 0.0
    %172 = vmatprep.subr.mxu0 0.0
    %173 = vmatpush1.xpose.msra.mxu0 %v140
    %174 = vmatprep.subr.mxu0 0.0
    %175 = vmatpush2.xpose.msra.mxu0 0.0
    %176 = vmatprep.subr.mxu0 0.0
    %177 = vmatpush2.xpose.msra.mxu0 0.0
    %178 = vmatprep.subr.mxu0 0.0
    %179 = vmatpush2.xpose.msra.mxu0 0.0
    %180 = vmatprep.subr.mxu0 0.0
    %181 = vmatpush2.xpose.msra.mxu0 0.0
    %182 = vmatprep.subr.mxu0 0.0
    %183 = vmatpush2.xpose.msra.mxu0 0.0
    %184 = vmatprep.subr.mxu0 0.0
    %185 = vmatpush2.xpose.msra.mxu0 0.0
    %186 = vmatprep.subr.mxu0 0.0
    %187 = vmatpush2.xpose.msra.mxu0 0.0
    %188 = vmatprep.subr.mxu0 0.0
    %189 = vmatpush2.xpose.msra.mxu0 0.0
    %190 = vmatprep.subr.mxu0 0.0
    %191 = vmatpush2.xpose.msra.mxu0 0.0
    %192 = vmatprep.subr.mxu0 0.0
    %193 = vmatpush2.xpose.msra.mxu0 0.0
    %194 = vmatprep.subr.mxu0 0.0
    %195 = vmatpush2.xpose.msra.mxu0 0.0
    %196 = vmatprep.subr.mxu0 0.0
    %197 = vmatpush2.xpose.msra.mxu0 0.0
    %198 = vmatprep.subr.mxu0 0.0
    %199 = vmatpush2.xpose.msra.mxu0 0.0
    %200 = vmatprep.subr.mxu0 0.0
    %201 = vmatpush2.xpose.msra.mxu0 0.0
    %202 = vmatprep.subr.mxu0 0.0
    %203 = vmatpush2.xpose.msra.mxu0 0.0
    %204 = vmatprep.subr.mxu0 0.0
    %205 = vmatpush2.xpose.msra.mxu0 0.0
    %206 = vmatprep.mubr.f32.mxu0 0.0
    %207 = vmatmul.mubr.f32.gmra.mxu0 %v138
    %v208 = vpop.f32.mrf.mxu0
    %v209 = vadd.f32 0.0, %v208
    %v210 = vpop.f32.mrf.mxu0
    %211 = vdwg.mxu0
    %v212 = vlaneseq
    %v213 = vshrl.u32 %v212, 7
    %v214 = vlaneseq
    %v215 = vand.u32 %v214, 127
    %vm216 = vcmp.lt.f32.partialorder %v134, %v209
    %vm217 = vcmp.eq.f32.partialorder %v134, %v209
    %vm218 = vcmp.lt.s32.totalorder %v213, %v215
    %vm219 = vmand %vm217, %vm218
    %vm220 = vmor %vm216, %vm219
    %v221 = vsel %vm220, 1, 0
    %v222 = vcvt.s32.f32 %v221
    %v223 = vpack.c.bf16 %v222, %v222
    %v225 = vsel %vm56, 1065369472, 0
    %vm227 = vcmask 1043456
    %v229 = vsel %vm227, %v223, 0
    %231 = vmatprep.subr.bf16.mxu0 0
    %232 = vmatpush1.bf16.msra.mxu0 0
    %233 = vmatprep.subr.bf16.mxu0 0
    %234 = vmatpush1.bf16.msra.mxu0 0
    %235 = vmatprep.subr.bf16.mxu0 0
    %236 = vmatpush1.bf16.msra.mxu0 0
    %237 = vmatprep.subr.bf16.mxu0 0
    %238 = vmatpush1.bf16.msra.mxu0 0
    %239 = vmatprep.subr.bf16.mxu0 0
    %240 = vmatpush1.bf16.msra.mxu0 0
    %241 = vmatprep.subr.bf16.mxu0 0
    %242 = vmatpush1.bf16.msra.mxu0 0
    %243 = vmatprep.subr.bf16.mxu0 0
    %244 = vmatpush1.bf16.msra.mxu0 0
    %245 = vmatprep.subr.bf16.mxu0 0
    %246 = vmatpush1.bf16.msra.mxu0 %v229
    %247 = vmatprep.subr.bf16.mxu0 0
    %248 = vmatpush2.bf16.msra.mxu0 0
    %249 = vmatprep.subr.bf16.mxu0 0
    %250 = vmatpush2.bf16.msra.mxu0 0
    %251 = vmatprep.subr.bf16.mxu0 0
    %252 = vmatpush2.bf16.msra.mxu0 0
    %253 = vmatprep.subr.bf16.mxu0 0
    %254 = vmatpush2.bf16.msra.mxu0 0
    %255 = vmatprep.subr.bf16.mxu0 0
    %256 = vmatpush2.bf16.msra.mxu0 0
    %257 = vmatprep.subr.bf16.mxu0 0
    %258 = vmatpush2.bf16.msra.mxu0 0
    %259 = vmatprep.subr.bf16.mxu0 0
    %260 = vmatpush2.bf16.msra.mxu0 0
    %261 = vmatprep.subr.bf16.mxu0 0
    %262 = vmatpush2.bf16.msra.mxu0 0
    %263 = vmatprep.mubr.bf16.mxu0 0
    %264 = vmatmul.mubr.bf16.gmra.mxu0 %v225
    %v265 = vpop.f32.mrf.mxu0
    %v266 = vadd.f32 0.0, %v265
    %v267 = vpop.f32.mrf.mxu0
    %v268 = vpop.f32.mrf.mxu0
    %v269 = vpop.f32.mrf.mxu0
    %270 = vdwg.mxu0
    %vm271 = vcmp.lt.f32.partialorder %v266, 4.0
    %v272 = vsel %vm271, 1, 0
    %v273 = vcvt.s32.f32 %v272
    %v274 = vsel %vm56, 1.0, 0
    %276 = vmatprep.subr.mxu0 0.0
    %277 = vmatpush1.msra.mxu0 0.0
    %278 = vmatprep.subr.mxu0 0.0
    %279 = vmatpush1.msra.mxu0 0.0
    %280 = vmatprep.subr.mxu0 0.0
    %281 = vmatpush1.msra.mxu0 0.0
    %282 = vmatprep.subr.mxu0 0.0
    %283 = vmatpush1.msra.mxu0 0.0
    %284 = vmatprep.subr.mxu0 0.0
    %285 = vmatpush1.msra.mxu0 0.0
    %286 = vmatprep.subr.mxu0 0.0
    %287 = vmatpush1.msra.mxu0 0.0
    %288 = vmatprep.subr.mxu0 0.0
    %289 = vmatpush1.msra.mxu0 0.0
    %290 = vmatprep.subr.mxu0 0.0
    %291 = vmatpush1.msra.mxu0 0.0
    %292 = vmatprep.subr.mxu0 0.0
    %293 = vmatpush1.msra.mxu0 0.0
    %294 = vmatprep.subr.mxu0 0.0
    %295 = vmatpush1.msra.mxu0 0.0
    %296 = vmatprep.subr.mxu0 0.0
    %297 = vmatpush1.msra.mxu0 0.0
    %298 = vmatprep.subr.mxu0 0.0
    %299 = vmatpush1.msra.mxu0 0.0
    %300 = vmatprep.subr.mxu0 0.0
    %301 = vmatpush1.msra.mxu0 0.0
    %302 = vmatprep.subr.mxu0 0.0
    %303 = vmatpush1.msra.mxu0 0.0
    %304 = vmatprep.subr.mxu0 0.0
    %305 = vmatpush1.msra.mxu0 0.0
    %306 = vmatprep.subr.mxu0 0.0
    %307 = vmatpush1.msra.mxu0 %v55
    %308 = vmatprep.subr.mxu0 0.0
    %309 = vmatpush2.msra.mxu0 0.0
    %310 = vmatprep.subr.mxu0 0.0
    %311 = vmatpush2.msra.mxu0 0.0
    %312 = vmatprep.subr.mxu0 0.0
    %313 = vmatpush2.msra.mxu0 0.0
    %314 = vmatprep.subr.mxu0 0.0
    %315 = vmatpush2.msra.mxu0 0.0
    %316 = vmatprep.subr.mxu0 0.0
    %317 = vmatpush2.msra.mxu0 0.0
    %318 = vmatprep.subr.mxu0 0.0
    %319 = vmatpush2.msra.mxu0 0.0
    %320 = vmatprep.subr.mxu0 0.0
    %321 = vmatpush2.msra.mxu0 0.0
    %322 = vmatprep.subr.mxu0 0.0
    %323 = vmatpush2.msra.mxu0 0.0
    %324 = vmatprep.subr.mxu0 0.0
    %325 = vmatpush2.msra.mxu0 0.0
    %326 = vmatprep.subr.mxu0 0.0
    %327 = vmatpush2.msra.mxu0 0.0
    %328 = vmatprep.subr.mxu0 0.0
    %329 = vmatpush2.msra.mxu0 0.0
    %330 = vmatprep.subr.mxu0 0.0
    %331 = vmatpush2.msra.mxu0 0.0
    %332 = vmatprep.subr.mxu0 0.0
    %333 = vmatpush2.msra.mxu0 0.0
    %334 = vmatprep.subr.mxu0 0.0
    %335 = vmatpush2.msra.mxu0 0.0
    %336 = vmatprep.subr.mxu0 0.0
    %337 = vmatpush2.msra.mxu0 0.0
    %338 = vmatprep.subr.mxu0 0.0
    %339 = vmatpush2.msra.mxu0 0.0
    %340 = vmatprep.mubr.f32.mxu0 0.0
    %341 = vmatmul.mubr.f32.gmra.mxu0 %v274
    %v342 = vpop.f32.mrf.mxu0
    %v343 = vadd.f32 0.0, %v342
    %v344 = vpop.f32.mrf.mxu0
    %345 = vdwg.mxu0
    %v346 = vmul.f32 %v273, %v343
    %vm347 = vcmask 57344
    %v348 = vsel %vm347, %v346, 0.0
    %349 = vadd.xlane.f32.xlu0 %v348
    %v350 = vpop.xlane.xlu0 %349
    %v351 = vrot.slane %v350, 4
    %v352 = vadd.f32 %v350, %v351
    %v353 = vrot.slane %v352, 2
    %v354 = vadd.f32 %v352, %v353
    %v355 = vrot.slane %v354, 1
    %v356 = vadd.f32 %v354, %v355
    %s357 = vtos %v356
    %s358 = sld [smem:[#allocation2]]
    %s359 = ssub.f32 %s358, 50.0
    %s360 = sld [smem:[#allocation2 + $0x1]]
    %s361 = ssub.f32 %s360, 50.0
    %v362 = vstv %s361
    %v363 = vrcp.pop %v362
    %s364 = vtos %v363
    %s365 = smul.f32 %s359, %s364
    %s366 = smax.f32 %s365, 0.0
    %s367 = smul.f32 %s357, 0.015625
    %s368 = smul.f32 %s366, %s367
    %s369 = scalar_lea.smem [#allocation9], 0
    %370 = sst [smem:[%s369]] %s368
    // Predicated region
    $region26: #{tpu_custom_call.1} parent=1 // pred_check
      _
    $region27: #{tpu_custom_call.1} parent=1 // pred_check_branch
      %372 = sbr.rel (0) target = $region29
    $region28: #{tpu_custom_call.1} parent=1 // pred_region
      %s374 = ssub.s32 16, 16
      %375 = vsyncadd [#allocation5], %s374
      %378 = dma.smem_to_hbm [#allocation9], 16, %s3, [#allocation5]
    $region29: #{tpu_custom_call.1} parent=1 // pred_fallthru
      _
    // Predicated region
    $region30: #{tpu_custom_call.1} parent=1 // pred_check
      _
    $region31: #{tpu_custom_call.1} parent=1 // pred_check_branch
      %380 = sbr.rel (0) target = $region33
    $region32: #{tpu_custom_call.1} parent=1 // pred_region
      %381 = dma.done [#allocation5], 16
    $region33: #{tpu_custom_call.1} parent=1 // pred_fallthru
      _
    %382 = sfence
    %383 = vsyncpa [#allocation3], 1
    %384 = vsyncpa [#allocation8], 1
    %385 = vsyncpa [#allocation4], 1
    %386 = vsyncpa [#allocation5], 1

</llo_original>
